<compile_context>
chip_gen: v7x
topology: tpu7x:2x2x1
jax: 0.10.0
libtpu: 0.0.40
codegen_flags: <defaults>
</compile_context>

<pallas_src>
import functools

import jax
import jax.numpy as jnp
from jax.experimental import pallas as pl
from jax.experimental.pallas import tpu as pltpu

ALPHA = 0.5
BETA = 0.5
SMOOTH = 1.0

LANES = 128
ACC_ROWS = 8                       # one f32 vreg tile of accumulator
MAX_BLOCK_ROWS = 2048              # 2048*128*4B = 1 MiB / input / buffer
ALIGN_ELEMS = ACC_ROWS * LANES     # 1024: keeps block rows a multiple of 8


def _partial_sums_kernel(pred_ref, targ_ref, pt_ref, p_ref, t_ref, *,
                         k_tiles, block_rows, full_blocks, total_blocks,
                         n_valid):
    """Accumulates per-split partial sums of p*t, p, t into (8,128) outputs."""
    j = pl.program_id(0)   # megacore-parallel split
    k = pl.program_id(1)   # sequential reduction axis

    @pl.when(k == 0)
    def _():
        pt_ref[...] = jnp.zeros_like(pt_ref)
        p_ref[...] = jnp.zeros_like(p_ref)
        t_ref[...] = jnp.zeros_like(t_ref)

    # Cast per tile (inputs arrive in their original dtype).
    p = jax.nn.sigmoid(pred_ref[...].astype(jnp.float32))
    t = targ_ref[...].astype(jnp.float32)

    chunks = block_rows // ACC_ROWS
    block_elems = block_rows * LANES

    def accumulate(pv, tv):
        pt = pv * tv
        # Leading-axis reduce: layout-preserving reshape + pure VALU add tree.
        pt_ref[...] += pt.reshape(chunks, ACC_ROWS, LANES).sum(axis=0)
        p_ref[...] += pv.reshape(chunks, ACC_ROWS, LANES).sum(axis=0)
        t_ref[...] += tv.reshape(chunks, ACC_ROWS, LANES).sum(axis=0)

    if full_blocks == total_blocks:
        # Every block is fully valid (static fact) -> no masking anywhere.
        accumulate(p, t)
    else:
        b = j * k_tiles + k  # logical (global) block id

        @pl.when(b < full_blocks)
        def _():
            accumulate(p, t)

        @pl.when(b >= full_blocks)
        def _():
            # Last (partial) block and any phantom blocks: mask out elements
            # at or beyond n_valid. Garbage/padded data is selected away.
            limit = n_valid - b * block_elems          # scalar, may be <= 0
            row = jax.lax.broadcasted_iota(jnp.int32, (block_rows, LANES), 0)
            lane = jax.lax.broadcasted_iota(jnp.int32, (block_rows, LANES), 1)
            mask = (row * LANES + lane) < limit
            zero = jnp.float32(0.0)
            accumulate(jnp.where(mask, p, zero), jnp.where(mask, t, zero))


def tversky_loss(pred, target, alpha=ALPHA, beta=BETA, smooth=SMOOTH):
    """Pallas TPU implementation of TverskyLoss.forward(pred, target)."""
    n = pred.size
    assert target.size == n, "pred/target element counts must match"

    pred_flat = pred.reshape(-1)
    targ_flat = target.reshape(-1)

    # Only pad when the element count is not already a multiple of one
    # accumulator tile (8*128). Pad values are irrelevant (masked in-kernel).
    # For typical image tensors this is a no-op (no HBM copy).
    n_pad = pl.cdiv(n, ALIGN_ELEMS) * ALIGN_ELEMS
    if n_pad != n:
        pred_flat = jnp.pad(pred_flat, (0, n_pad - n))
        targ_flat = jnp.pad(targ_flat, (0, n_pad - n))

    rows = n_pad // LANES                      # multiple of 8
    pred2d = pred_flat.reshape(rows, LANES)
    targ2d = targ_flat.reshape(rows, LANES)

    block_rows = min(MAX_BLOCK_ROWS, rows)     # multiple of 8 (or full extent)
    block_elems = block_rows * LANES
    nb = pl.cdiv(rows, block_rows)             # real row-blocks
    num_splits = 2 if nb >= 2 else 1           # v7x: one split per TensorCore
    k_tiles = pl.cdiv(nb, num_splits)
    total_blocks = num_splits * k_tiles        # logical blocks covered by grid
    full_blocks = n // block_elems             # blocks with no invalid element

    if total_blocks == nb:
        def in_index(j, k):
            return (j * k_tiles + k, 0)
    else:
        # Phantom blocks (logical id >= nb) are clamped to the last real block
        # and fully masked inside the kernel.
        def in_index(j, k):
            return (jnp.minimum(j * k_tiles + k, nb - 1), 0)

    kernel = functools.partial(
        _partial_sums_kernel,
        k_tiles=k_tiles,
        block_rows=block_rows,
        full_blocks=full_blocks,
        total_blocks=total_blocks,
        n_valid=n,
    )

    acc_shape = jax.ShapeDtypeStruct((num_splits * ACC_ROWS, LANES),
                                     jnp.float32)
    out_spec = pl.BlockSpec((ACC_ROWS, LANES), lambda j, k: (j, 0))

    sum_pt, sum_p, sum_t = pl.pallas_call(
        kernel,
        out_shape=(acc_shape, acc_shape, acc_shape),
        grid_spec=pltpu.PrefetchScalarGridSpec(
            num_scalar_prefetch=0,
            grid=(num_splits, k_tiles),
            in_specs=[
                pl.BlockSpec((block_rows, LANES), in_index),
                pl.BlockSpec((block_rows, LANES), in_index),
            ],
            out_specs=[out_spec, out_spec, out_spec],
        ),
        compiler_params=pltpu.CompilerParams(
            dimension_semantics=("parallel", "arbitrary"),
            vmem_limit_bytes=32 * 1024 * 1024,
        ),
    )(pred2d, targ2d)

    # Tiny epilogue in plain JAX: combine per-core partials, derive FP/FN.
    tp = jnp.sum(sum_pt)
    sp = jnp.sum(sum_p)
    st = jnp.sum(sum_t)
    fp = sp - tp
    fn = st - tp
    tversky = (tp + smooth) / (tp + alpha * fp + beta * fn + smooth)
    return 1.0 - tversky


def _reference(pred, target, alpha=ALPHA, beta=BETA, smooth=SMOOTH):
    p = jax.nn.sigmoid(pred.astype(jnp.float32)).reshape(-1)
    t = target.astype(jnp.float32).reshape(-1)
    tp = jnp.sum(p * t)
    fp = jnp.sum((1.0 - t) * p)
    fn = jnp.sum(t * (1.0 - p))
    tversky = (tp + smooth) / (tp + alpha * fp + beta * fn + smooth)
    return 1.0 - tversky


if __name__ == "__main__":
    key = jax.random.PRNGKey(0)
    k1, k2 = jax.random.split(key)
    # NCHW logits and binary targets, small shapes.
    pred = jax.random.normal(k1, (2, 4, 16, 16), dtype=jnp.float32)
    target = (jax.random.uniform(k2, (2, 4, 16, 16)) > 0.5).astype(jnp.float32)

    loss = tversky_loss(pred, target)
    loss = jax.block_until_ready(loss)

    ref = _reference(pred, target)
    assert jnp.allclose(loss, ref, atol=1e-5, rtol=1e-5), (loss, ref)
    print("KERNEL_OK")
</pallas_src>

<mosaic_0001>
module attributes {stable_mosaic.version = 11 : i64} {
  func.func @_partial_sums_kernel(%arg0: i32, %arg1: i32, %arg2: memref<16x128xf32, #tpu.memory_space<vmem>>, %arg3: memref<16x128xf32, #tpu.memory_space<vmem>>, %arg4: memref<8x128xf32, #tpu.memory_space<vmem>>, %arg5: memref<8x128xf32, #tpu.memory_space<vmem>>, %arg6: memref<8x128xf32, #tpu.memory_space<vmem>>) attributes {dimension_semantics = [#tpu.dimension_semantics<parallel>, #tpu.dimension_semantics<arbitrary>], iteration_bounds = array<i64: 1, 1>, scalar_prefetch = 0 : i64, scratch_operands = 0 : i64, tpu.core_type = #tpu.core_type<tc>, window_params = [{transform_indices = @transform_0, window_bounds = array<i64: 16, 128>}, {transform_indices = @transform_1, window_bounds = array<i64: 16, 128>}, {transform_indices = @transform_2, window_bounds = array<i64: 8, 128>}, {transform_indices = @transform_3, window_bounds = array<i64: 8, 128>}, {transform_indices = @transform_4, window_bounds = array<i64: 8, 128>}]} {
    %c0_i32 = arith.constant 0 : i32
    %0 = arith.cmpi eq, %arg1, %c0_i32 : i32
    %1 = arith.extui %0 : i1 to i32
    %c0_i32_0 = arith.constant 0 : i32
    %2 = arith.cmpi ne, %1, %c0_i32_0 : i32
    scf.if %2 {
      %cst_19 = arith.constant 0.000000e+00 : f32
      %26 = vector.broadcast %cst_19 : f32 to vector<8x128xf32>
      %c0_20 = arith.constant 0 : index
      %c0_21 = arith.constant 0 : index
      %27 = vector.load %arg4[%c0_20, %c0_21] : memref<8x128xf32, #tpu.memory_space<vmem>>, vector<8x128xf32>
      tpu.vector_store %arg4[%c0_20, %c0_21], %26 {strides = array<i32>} : memref<8x128xf32, #tpu.memory_space<vmem>>, vector<8x128xf32>,
      %cst_22 = arith.constant 0.000000e+00 : f32
      %28 = vector.broadcast %cst_22 : f32 to vector<8x128xf32>
      %c0_23 = arith.constant 0 : index
      %c0_24 = arith.constant 0 : index
      %29 = vector.load %arg5[%c0_23, %c0_24] : memref<8x128xf32, #tpu.memory_space<vmem>>, vector<8x128xf32>
      tpu.vector_store %arg5[%c0_23, %c0_24], %28 {strides = array<i32>} : memref<8x128xf32, #tpu.memory_space<vmem>>, vector<8x128xf32>,
      %cst_25 = arith.constant 0.000000e+00 : f32
      %30 = vector.broadcast %cst_25 : f32 to vector<8x128xf32>
      %c0_26 = arith.constant 0 : index
      %c0_27 = arith.constant 0 : index
      %31 = vector.load %arg6[%c0_26, %c0_27] : memref<8x128xf32, #tpu.memory_space<vmem>>, vector<8x128xf32>
      tpu.vector_store %arg6[%c0_26, %c0_27], %30 {strides = array<i32>} : memref<8x128xf32, #tpu.memory_space<vmem>>, vector<8x128xf32>,
    } else {
    }
    %c0 = arith.constant 0 : index
    %c0_1 = arith.constant 0 : index
    %3 = vector.load %arg2[%c0, %c0_1] : memref<16x128xf32, #tpu.memory_space<vmem>>, vector<16x128xf32>
    %4 = arith.negf %3 : vector<16x128xf32>
    %5 = math.exp %4 : vector<16x128xf32>
    %cst = arith.constant 1.000000e+00 : f32
    %6 = vector.broadcast %cst : f32 to vector<16x128xf32>
    %7 = arith.addf %6, %5 : vector<16x128xf32>
    %8 = arith.divf %6, %7 : vector<16x128xf32>
    %c0_2 = arith.constant 0 : index
    %c0_3 = arith.constant 0 : index
    %9 = vector.load %arg3[%c0_2, %c0_3] : memref<16x128xf32, #tpu.memory_space<vmem>>, vector<16x128xf32>
    %10 = arith.mulf %8, %9 : vector<16x128xf32>
    %c0_4 = arith.constant 0 : index
    %c0_5 = arith.constant 0 : index
    %11 = vector.load %arg4[%c0_4, %c0_5] : memref<8x128xf32, #tpu.memory_space<vmem>>, vector<8x128xf32>
    %12 = vector.shape_cast %10 : vector<16x128xf32> to vector<2x8x128xf32>
    %cst_6 = arith.constant dense<0.000000e+00> : vector<8x128xf32>
    %13 = vector.multi_reduction <add>, %12, %cst_6 [0] : vector<2x8x128xf32> to vector<8x128xf32>
    %14 = arith.addf %11, %13 : vector<8x128xf32>
    %c0_7 = arith.constant 0 : index
    %c0_8 = arith.constant 0 : index
    %15 = vector.load %arg4[%c0_7, %c0_8] : memref<8x128xf32, #tpu.memory_space<vmem>>, vector<8x128xf32>
    tpu.vector_store %arg4[%c0_7, %c0_8], %14 {strides = array<i32>} : memref<8x128xf32, #tpu.memory_space<vmem>>, vector<8x128xf32>,
    %c0_9 = arith.constant 0 : index
    %c0_10 = arith.constant 0 : index
    %16 = vector.load %arg5[%c0_9, %c0_10] : memref<8x128xf32, #tpu.memory_space<vmem>>, vector<8x128xf32>
    %17 = vector.shape_cast %8 : vector<16x128xf32> to vector<2x8x128xf32>
    %cst_11 = arith.constant dense<0.000000e+00> : vector<8x128xf32>
    %18 = vector.multi_reduction <add>, %17, %cst_11 [0] : vector<2x8x128xf32> to vector<8x128xf32>
    %19 = arith.addf %16, %18 : vector<8x128xf32>
    %c0_12 = arith.constant 0 : index
    %c0_13 = arith.constant 0 : index
    %20 = vector.load %arg5[%c0_12, %c0_13] : memref<8x128xf32, #tpu.memory_space<vmem>>, vector<8x128xf32>
    tpu.vector_store %arg5[%c0_12, %c0_13], %19 {strides = array<i32>} : memref<8x128xf32, #tpu.memory_space<vmem>>, vector<8x128xf32>,
    %c0_14 = arith.constant 0 : index
    %c0_15 = arith.constant 0 : index
    %21 = vector.load %arg6[%c0_14, %c0_15] : memref<8x128xf32, #tpu.memory_space<vmem>>, vector<8x128xf32>
    %22 = vector.shape_cast %9 : vector<16x128xf32> to vector<2x8x128xf32>
    %cst_16 = arith.constant dense<0.000000e+00> : vector<8x128xf32>
    %23 = vector.multi_reduction <add>, %22, %cst_16 [0] : vector<2x8x128xf32> to vector<8x128xf32>
    %24 = arith.addf %21, %23 : vector<8x128xf32>
    %c0_17 = arith.constant 0 : index
    %c0_18 = arith.constant 0 : index
    %25 = vector.load %arg6[%c0_17, %c0_18] : memref<8x128xf32, #tpu.memory_space<vmem>>, vector<8x128xf32>
    tpu.vector_store %arg6[%c0_17, %c0_18], %24 {strides = array<i32>} : memref<8x128xf32, #tpu.memory_space<vmem>>, vector<8x128xf32>,
    return
  }
  func.func @transform_0(%arg0: i32, %arg1: i32) -> (i32, i32) {
    %c1_i32 = arith.constant 1 : i32
    %0 = arith.muli %arg0, %c1_i32 : i32
    %1 = arith.addi %0, %arg1 : i32
    %c0_i32 = arith.constant 0 : i32
    %c0_i32_0 = arith.constant 0 : i32
    return %1, %c0_i32 : i32, i32
  }
  func.func @transform_1(%arg0: i32, %arg1: i32) -> (i32, i32) {
    %c1_i32 = arith.constant 1 : i32
    %0 = arith.muli %arg0, %c1_i32 : i32
    %1 = arith.addi %0, %arg1 : i32
    %c0_i32 = arith.constant 0 : i32
    %c0_i32_0 = arith.constant 0 : i32
    return %1, %c0_i32 : i32, i32
  }
  func.func @transform_2(%arg0: i32, %arg1: i32) -> (i32, i32) {
    %c0_i32 = arith.constant 0 : i32
    %c0_i32_0 = arith.constant 0 : i32
    return %arg0, %c0_i32 : i32, i32
  }
  func.func @transform_3(%arg0: i32, %arg1: i32) -> (i32, i32) {
    %c0_i32 = arith.constant 0 : i32
    %c0_i32_0 = arith.constant 0 : i32
    return %arg0, %c0_i32 : i32, i32
  }
  func.func @transform_4(%arg0: i32, %arg1: i32) -> (i32, i32) {
    %c0_i32 = arith.constant 0 : i32
    %c0_i32_0 = arith.constant 0 : i32
    return %arg0, %c0_i32 : i32, i32
  }
}

</mosaic_0001>

<llo_original>
// kernel: tpu_custom_call.1
$region0: #{tpu_custom_call.1}
  #allocation0 [shape = 'u32[]', space=smem, size = 0x4, offset = 0x4, fixed_abs, tag = 'smem constant byte address 0x4 - core index']
  #allocation1 [shape = 'u32[144,128]{1,0:T(1,128)}', space=vmem, size = 0x12000, scoped, tag = 'internal scratch']
  %s0 = inlined_call_operand.hbm [shape: f32[16,128], index: 0, kind: input, shape index: {}]
  %s1 = inlined_call_operand.hbm [shape: f32[16,128], index: 1, kind: input, shape index: {}]
  %s2 = inlined_call_operand.hbm [shape: f32[8,128], index: 2, kind: output, shape index: {0}]
  %s3 = inlined_call_operand.hbm [shape: f32[8,128], index: 3, kind: output, shape index: {1}]
  %s4 = inlined_call_operand.hbm [shape: f32[8,128], index: 4, kind: output, shape index: {2}]
  %5 = xla_tuple %s2, %s3, %s4
  %s6 = sld [smem:[#allocation0]]
  $region46: #{tpu_custom_call.1} parent=0
    _
  %s8 = ssub.s32 1, %s6
  %s9 = scalar_select 0, %s8, %s6
  $region1: #{tpu_custom_call.1} parent=0
    #allocation2 [shape = 'u8[8192]{0}', space=vmem, size = 0x2000, scoped, tag = 'input window, operand 0, single buffered']
    #allocation3 [shape = 's32[1]{0}', space=sflag, size = 0x4, scoped, tag = 'scoped memory for tpu_custom_call.1']
    #allocation4 [shape = 's32[1]{0}', space=sflag, size = 0x4, scoped, tag = 'scoped memory for tpu_custom_call.1']
    #allocation5 [shape = 'u8[8192]{0}', space=vmem, size = 0x2000, scoped, tag = 'input window, operand 1, single buffered']
    #allocation6 [shape = 's32[1]{0}', space=sflag, size = 0x4, scoped, tag = 'scoped memory for tpu_custom_call.1']
    #allocation7 [shape = 'u8[4096]{0}', space=vmem, size = 0x1000, scoped, tag = 'output window, operand 0, single buffered']
    #allocation8 [shape = 'u8[4096]{0}', space=vmem, size = 0x1000, scoped, tag = 'output window, operand 1, single buffered']
    #allocation9 [shape = 's32[1]{0}', space=sflag, size = 0x4, scoped, tag = 'scoped memory for tpu_custom_call.1']
    #allocation10 [shape = 'u8[4096]{0}', space=vmem, size = 0x1000, scoped, tag = 'output window, operand 2, single buffered']
    %10 = vsyncpa [#allocation3], 0
    %11 = vsyncpa [#allocation6], 0
    %12 = vsyncpa [#allocation4], 0
    %13 = vsyncpa [#allocation9], 0
    // Predicated region
    $region2: #{tpu_custom_call.1} parent=1 // pred_check
      _
    $region3: #{tpu_custom_call.1} parent=1 // pred_check_branch
      %15 = sbr.rel (0) target = $region5
    $region4: #{tpu_custom_call.1} parent=1 // pred_region
      %s16 = sadd.s32 0, 0
      %s17 = smul.u32 2, %s16
      %s19 = ssub.s32 256, 256
      %20 = vsyncadd [#allocation3], %s19
      %s21 = smul.addr %s17, 128
      %s22 = scalar_lea.hbm %s0, %s21
      %s23 = sshll.u32 [#allocation2], 4
      %s24 = int_to_ptr.vmem [resolvable:$true] %s23
      %29 = dma.hbm_to_vmem [thread:$0]  %s22, 256, %s24, [#allocation3], 128, 128, 8
    $region5: #{tpu_custom_call.1} parent=1 // pred_fallthru
      _
    // Predicated region
    $region6: #{tpu_custom_call.1} parent=1 // pred_check
      _
    $region7: #{tpu_custom_call.1} parent=1 // pred_check_branch
      %31 = sbr.rel (0) target = $region9
    $region8: #{tpu_custom_call.1} parent=1 // pred_region
      %s32 = sadd.s32 0, 0
      %s33 = smul.u32 2, %s32
      %s35 = ssub.s32 256, 256
      %36 = vsyncadd [#allocation6], %s35
      %s37 = smul.addr %s33, 128
      %s38 = scalar_lea.hbm %s1, %s37
      %s39 = sshll.u32 [#allocation5], 4
      %s40 = int_to_ptr.vmem [resolvable:$true] %s39
      %45 = dma.hbm_to_vmem [thread:$0]  %s38, 256, %s40, [#allocation6], 128, 128, 8
    $region9: #{tpu_custom_call.1} parent=1 // pred_fallthru
      _
    // Predicated region
    $region10: #{tpu_custom_call.1} parent=1 // pred_check
      _
    $region11: #{tpu_custom_call.1} parent=1 // pred_check_branch
      %47 = sbr.rel (0) target = $region13
    $region12: #{tpu_custom_call.1} parent=1 // pred_region
      %48 = dma.done [#allocation3], 256
    $region13: #{tpu_custom_call.1} parent=1 // pred_fallthru
      _
    // Predicated region
    $region14: #{tpu_custom_call.1} parent=1 // pred_check
      _
    $region15: #{tpu_custom_call.1} parent=1 // pred_check_branch
      %50 = sbr.rel (0) target = $region17
    $region16: #{tpu_custom_call.1} parent=1 // pred_region
      %51 = dma.done [#allocation6], 256
    $region17: #{tpu_custom_call.1} parent=1 // pred_fallthru
      _
    %s52 = sadd.s32 0, 0
    %s53 = smul.u32 2, %s52
    %s54 = sadd.s32 0, 0
    %s55 = smul.u32 2, %s54
    %p56 = scmp.eq.s32.totalorder 0, 0
    // Predicated region
    $region18: #{tpu_custom_call.1} parent=1 // pred_check
      %p57 = pneg %p56
    $region19: #{tpu_custom_call.1} parent=1 // pred_check_branch
      %59 = sbr.rel (%p57) target = $region21
    $region20: #{tpu_custom_call.1} parent=1 // pred_region
      %60 = vst [vmem:[#allocation7] sm:$0xff] 0.0
      %61 = vst [vmem:[#allocation8] sm:$0xff] 0.0
      %62 = vst [vmem:[#allocation10] sm:$0xff] 0.0
    $region21: #{tpu_custom_call.1} parent=1 // pred_fallthru
      _
    %v63 = vld [vmem:[#allocation2] sm:$0xff]
    %v64 = vld [vmem:[#allocation2 + $0x8] sm:$0xff]
    %v65 = vxor.u32 %v63, 2147483648
    %v66 = vxor.u32 %v64, 2147483648
    %v67 = vmul.f32 %v65, 1.442695
    %v68 = vpow.pop %v67
    %v69 = vmul.f32 %v66, 1.442695
    %v70 = vpow.pop %v69
    %v71 = vadd.f32 %v68, 1.0
    %v72 = vadd.f32 %v70, 1.0
    %v73 = vrcp.pop %v71
    %v74 = vmul.f32 1.0, %v73
    %v75 = vrcp.pop %v72
    %v76 = vmul.f32 1.0, %v75
    %v77 = vld [vmem:[#allocation5] sm:$0xff]
    %v78 = vld [vmem:[#allocation5 + $0x8] sm:$0xff]
    %v79 = vmul.f32 %v74, %v77
    %v80 = vmul.f32 %v76, %v78
    %v81 = vld [vmem:[#allocation7] sm:$0xff]
    %v82 = vadd.f32 %v79, %v80
    %v83 = vadd.f32 %v81, %v82
    %84 = vst [vmem:[#allocation7] sm:$0xff] %v83
    %v85 = vld [vmem:[#allocation8] sm:$0xff]
    %v86 = vadd.f32 %v74, %v76
    %v87 = vadd.f32 %v85, %v86
    %88 = vst [vmem:[#allocation8] sm:$0xff] %v87
    %v89 = vld [vmem:[#allocation10] sm:$0xff]
    %v90 = vadd.f32 %v77, %v78
    %v91 = vadd.f32 %v89, %v90
    %92 = vst [vmem:[#allocation10] sm:$0xff] %v91
    // Predicated region
    $region22: #{tpu_custom_call.1} parent=1 // pred_check
      _
    $region23: #{tpu_custom_call.1} parent=1 // pred_check_branch
      %94 = sbr.rel (0) target = $region25
    $region24: #{tpu_custom_call.1} parent=1 // pred_region
      %s96 = ssub.s32 128, 128
      %97 = vsyncadd [#allocation4], %s96
      %s99 = sshll.u32 [#allocation7], 4
      %s100 = int_to_ptr.vmem [resolvable:$true] %s99
      %102 = dma.vmem_to_hbm [thread:$0]  %s100, 128, %s2, [#allocation4]
    $region25: #{tpu_custom_call.1} parent=1 // pred_fallthru
      _
    // Predicated region
    $region26: #{tpu_custom_call.1} parent=1 // pred_check
      _
    $region27: #{tpu_custom_call.1} parent=1 // pred_check_branch
      %104 = sbr.rel (0) target = $region29
    $region28: #{tpu_custom_call.1} parent=1 // pred_region
      %s106 = ssub.s32 128, 128
      %107 = vsyncadd [#allocation9], %s106
      %s109 = sshll.u32 [#allocation8], 4
      %s110 = int_to_ptr.vmem [resolvable:$true] %s109
      %112 = dma.vmem_to_hbm [thread:$0]  %s110, 128, %s3, [#allocation9]
    $region29: #{tpu_custom_call.1} parent=1 // pred_fallthru
      _
    // Predicated region
    $region30: #{tpu_custom_call.1} parent=1 // pred_check
      _
    $region31: #{tpu_custom_call.1} parent=1 // pred_check_branch
      %114 = sbr.rel (0) target = $region33
    $region32: #{tpu_custom_call.1} parent=1 // pred_region
      %s116 = ssub.s32 128, 128
      %117 = vsyncadd [#allocation9], %s116
      %s119 = sshll.u32 [#allocation10], 4
      %s120 = int_to_ptr.vmem [resolvable:$true] %s119
      %122 = dma.vmem_to_hbm [thread:$0]  %s120, 128, %s4, [#allocation9]
    $region33: #{tpu_custom_call.1} parent=1 // pred_fallthru
      _
    // Predicated region
    $region34: #{tpu_custom_call.1} parent=1 // pred_check
      _
    $region35: #{tpu_custom_call.1} parent=1 // pred_check_branch
      %124 = sbr.rel (0) target = $region37
    $region36: #{tpu_custom_call.1} parent=1 // pred_region
      %125 = dma.done [#allocation4], 128
    $region37: #{tpu_custom_call.1} parent=1 // pred_fallthru
      _
    // Predicated region
    $region38: #{tpu_custom_call.1} parent=1 // pred_check
      _
    $region39: #{tpu_custom_call.1} parent=1 // pred_check_branch
      %127 = sbr.rel (0) target = $region41
    $region40: #{tpu_custom_call.1} parent=1 // pred_region
      %128 = dma.done [#allocation9], 128
    $region41: #{tpu_custom_call.1} parent=1 // pred_fallthru
      _
    // Predicated region
    $region42: #{tpu_custom_call.1} parent=1 // pred_check
      _
    $region43: #{tpu_custom_call.1} parent=1 // pred_check_branch
      %130 = sbr.rel (0) target = $region45
    $region44: #{tpu_custom_call.1} parent=1 // pred_region
      %131 = dma.done [#allocation9], 128
    $region45: #{tpu_custom_call.1} parent=1 // pred_fallthru
      _
    %132 = vsyncpa [#allocation3], 1
    %133 = vsyncpa [#allocation6], 1
    %134 = vsyncpa [#allocation4], 1
    %135 = vsyncpa [#allocation9], 1

</llo_original>
